<compile_context>
chip_gen: v5e
topology: v5e:2x2
jax: 0.10.0
libtpu: 0.0.40
codegen_flags: <defaults>
</compile_context>

<pallas_src>
import jax
import jax.numpy as jnp
from jax.experimental import pallas as pl
from jax.experimental.pallas import tpu as pltpu

IN_DIM = 93      # logical input feature count (PyTorch spec)
K_PAD = 128      # contraction dim padded to a lane-aligned size
HIDDEN = 128
EPS = 1e-5


def linearmodel_kernel(x_ref, w1_ref, gamma_ref, beta_ref, w2_ref, b2_ref, o_ref):
    # ---- Linear 1 on the MXU: bf16 (B,128) @ bf16 (128,128) -> f32 (B,128).
    # Zero cols 93..127 of x / rows 93..127 of w1 contribute nothing.
    # b1 is intentionally absent: it cancels exactly under train-mode BN.
    h = jnp.dot(x_ref[...], w1_ref[...], preferred_element_type=jnp.float32)

    # ---- BatchNorm1d (training-mode biased batch statistics over axis 0),
    # one-pass stats, folded into a single scale/shift: h*scale + shift.
    n = h.shape[0]
    mean = jnp.sum(h, axis=0, keepdims=True) * (1.0 / n)             # (1, 128)
    e2 = jnp.sum(h * h, axis=0, keepdims=True) * (1.0 / n)           # (1, 128)
    var = jnp.maximum(e2 - mean * mean, 0.0)                         # clamp fp cancellation
    scale = gamma_ref[...] * jax.lax.rsqrt(var + EPS)                # rsqrt -> EUP
    shift = beta_ref[...] - mean * scale
    h = h * scale + shift

    # ---- ReLU
    h = jnp.maximum(h, 0.0)

    # ---- Linear 2 (128 -> 1) as VPU multiply + XLU lane reduction.
    # w2 arrives pre-transposed and lane-dense as (1, 128).
    out = jnp.sum(h * w2_ref[...], axis=1, keepdims=True)            # (B, 1)
    out = out + b2_ref[0]                                            # SMEM scalar bias

    o_ref[...] = out.astype(o_ref.dtype)


@jax.jit
def linearmodel_forward(x, w1_padded_bf16, gamma, beta, w2_t, b2):
    """x: (B, IN_DIM) f32.  w1_padded_bf16: (K_PAD, HIDDEN) bf16.
    gamma/beta/w2_t: (1, HIDDEN) f32.  b2: (1,) f32.
    Returns (B,) f32 matching Linearmodel.forward in train mode."""
    B, d = x.shape
    assert d == IN_DIM, d
    # Pad + cast fuse under jit into the operand copy for the pallas_call.
    x_pad = jnp.pad(x, ((0, 0), (0, K_PAD - IN_DIM))).astype(jnp.bfloat16)

    out = pl.pallas_call(
        linearmodel_kernel,
        out_shape=jax.ShapeDtypeStruct((B, 1), jnp.float32),
        in_specs=[
            pl.BlockSpec(memory_space=pltpu.VMEM),  # x_pad  (B, 128)   bf16
            pl.BlockSpec(memory_space=pltpu.VMEM),  # w1     (128, 128) bf16
            pl.BlockSpec(memory_space=pltpu.VMEM),  # gamma  (1, 128)
            pl.BlockSpec(memory_space=pltpu.VMEM),  # beta   (1, 128)
            pl.BlockSpec(memory_space=pltpu.VMEM),  # w2^T   (1, 128)
            pl.BlockSpec(memory_space=pltpu.SMEM),  # b2     (1,) scalar
        ],
        out_specs=pl.BlockSpec(memory_space=pltpu.VMEM),
    )(x_pad, w1_padded_bf16, gamma, beta, w2_t, b2)
    # PyTorch: .squeeze(1) -> (B,)  (slice folded under the same jit)
    return out[:, 0]


def init_params(key):
    """Deterministic init mirroring nn.Linear default (uniform +-1/sqrt(fan_in))
    and nn.BatchNorm1d default (gamma=1, beta=0).  Kernel layout: w1
    pre-transposed, zero-padded to (K_PAD, HIDDEN) and stored bf16; w2
    pre-transposed to a lane-dense (1, HIDDEN); b2 a 1-element 1D array.
    b1 is returned only for the PyTorch-semantics reference (it cancels under
    training-mode BatchNorm and is not passed to the kernel)."""
    k1, k2, k3, k4 = jax.random.split(key, 4)
    bound1 = 1.0 / jnp.sqrt(IN_DIM)
    w1 = jax.random.uniform(k1, (IN_DIM, HIDDEN), jnp.float32, -bound1, bound1)
    w1_padded_bf16 = jnp.pad(w1, ((0, K_PAD - IN_DIM), (0, 0))).astype(jnp.bfloat16)
    b1 = jax.random.uniform(k2, (1, HIDDEN), jnp.float32, -bound1, bound1)
    gamma = jnp.ones((1, HIDDEN), jnp.float32)
    beta = jnp.zeros((1, HIDDEN), jnp.float32)
    bound2 = 1.0 / jnp.sqrt(HIDDEN)
    w2_t = jax.random.uniform(k3, (1, HIDDEN), jnp.float32, -bound2, bound2)
    b2 = jax.random.uniform(k4, (1,), jnp.float32, -bound2, bound2)
    return w1_padded_bf16, b1, gamma, beta, w2_t, b2


def _bn_relu_out(h, gamma, beta, w2_t, b2):
    mean = jnp.mean(h, axis=0, keepdims=True)
    var = jnp.mean((h - mean) ** 2, axis=0, keepdims=True)
    h = (h - mean) / jnp.sqrt(var + EPS)
    h = h * gamma + beta
    h = jnp.maximum(h, 0.0)
    return (h @ w2_t.T)[:, 0] + b2[0]


def reference_matched(x, w1_padded_bf16, gamma, beta, w2_t, b2):
    """Reference replicating the kernel's bf16-input / f32-accumulate matmul
    exactly (no b1, same as kernel)."""
    xb = x.astype(jnp.bfloat16).astype(jnp.float32)
    w1 = w1_padded_bf16[:IN_DIM, :].astype(jnp.float32)
    h = xb @ w1
    return _bn_relu_out(h, gamma, beta, w2_t, b2)


def reference_pytorch_f32(x, w1_padded_bf16, b1, gamma, beta, w2_t, b2):
    """Pure-f32 PyTorch-semantics reference (includes b1, which cancels under
    train-mode BN).  Differs from the kernel only by bf16 weight/input
    quantization of the first matmul."""
    w1 = w1_padded_bf16[:IN_DIM, :].astype(jnp.float32)
    h = x @ w1 + b1
    return _bn_relu_out(h, gamma, beta, w2_t, b2)


if __name__ == "__main__":
    key = jax.random.PRNGKey(0)
    kx, kp = jax.random.split(key)

    B = 8
    x = jax.random.normal(kx, (B, IN_DIM), jnp.float32)
    w1_padded_bf16, b1, gamma, beta, w2_t, b2 = init_params(kp)

    out = linearmodel_forward(x, w1_padded_bf16, gamma, beta, w2_t, b2)
    out = jax.block_until_ready(out)
    assert out.shape == (B,), out.shape

    # Exact check against a reference with the same bf16 first matmul.
    ref_m = reference_matched(x, w1_padded_bf16, gamma, beta, w2_t, b2)
    assert jnp.allclose(out, ref_m, atol=1e-4, rtol=1e-4), (out, ref_m)

    # Sanity check against the full-f32 PyTorch-semantics path (with b1);
    # difference is bf16 weight/input quantization only.
    ref_f = reference_pytorch_f32(x, w1_padded_bf16, b1, gamma, beta, w2_t, b2)
    assert jnp.allclose(out, ref_f, atol=2e-2, rtol=2e-2), (out, ref_f)

    print("KERNEL_OK")
</pallas_src>

<mosaic_0001>
module attributes {stable_mosaic.version = 11 : i64} {
  func.func @linearmodel_kernel(%arg0: memref<8x128xbf16, #tpu.memory_space<vmem>>, %arg1: memref<128x128xbf16, #tpu.memory_space<vmem>>, %arg2: memref<1x128xf32, #tpu.memory_space<vmem>>, %arg3: memref<1x128xf32, #tpu.memory_space<vmem>>, %arg4: memref<1x128xf32, #tpu.memory_space<vmem>>, %arg5: memref<1xf32, #tpu.memory_space<smem>>, %arg6: memref<8x1xf32, #tpu.memory_space<vmem>>) attributes {dimension_semantics = [], scalar_prefetch = 0 : i64, scratch_operands = 0 : i64, tpu.core_type = #tpu.core_type<tc>} {
    %c0 = arith.constant 0 : index
    %c0_0 = arith.constant 0 : index
    %0 = vector.load %arg0[%c0, %c0_0] : memref<8x128xbf16, #tpu.memory_space<vmem>>, vector<8x128xbf16>
    %c0_1 = arith.constant 0 : index
    %c0_2 = arith.constant 0 : index
    %1 = vector.load %arg1[%c0_1, %c0_2] : memref<128x128xbf16, #tpu.memory_space<vmem>>, vector<128x128xbf16>
    %cst = arith.constant dense<0.000000e+00> : vector<8x128xf32>
    %2 = tpu.matmul %0, %1, %cst {dimension_numbers = #tpu.dot_dimension_numbers<[1], [0], [0], [1], [0, 0, 1, 1], [], []>} : vector<8x128xbf16>, vector<128x128xbf16>, vector<8x128xf32> -> vector<8x128xf32>
    %cst_3 = arith.constant dense<0.000000e+00> : vector<128xf32>
    %3 = vector.multi_reduction <add>, %2, %cst_3 [0] : vector<8x128xf32> to vector<128xf32>
    %4 = vector.shape_cast %3 : vector<128xf32> to vector<1x128xf32>
    %cst_4 = arith.constant 1.250000e-01 : f32
    %5 = vector.broadcast %cst_4 : f32 to vector<1x128xf32>
    %6 = arith.mulf %4, %5 : vector<1x128xf32>
    %7 = arith.mulf %2, %2 : vector<8x128xf32>
    %cst_5 = arith.constant dense<0.000000e+00> : vector<128xf32>
    %8 = vector.multi_reduction <add>, %7, %cst_5 [0] : vector<8x128xf32> to vector<128xf32>
    %9 = vector.shape_cast %8 : vector<128xf32> to vector<1x128xf32>
    %cst_6 = arith.constant 1.250000e-01 : f32
    %10 = vector.broadcast %cst_6 : f32 to vector<1x128xf32>
    %11 = arith.mulf %9, %10 : vector<1x128xf32>
    %12 = arith.mulf %6, %6 : vector<1x128xf32>
    %13 = arith.subf %11, %12 : vector<1x128xf32>
    %cst_7 = arith.constant 0.000000e+00 : f32
    %14 = vector.broadcast %cst_7 : f32 to vector<1x128xf32>
    %15 = arith.maximumf %13, %14 : vector<1x128xf32>
    %c0_8 = arith.constant 0 : index
    %c0_9 = arith.constant 0 : index
    %16 = vector.load %arg2[%c0_8, %c0_9] : memref<1x128xf32, #tpu.memory_space<vmem>>, vector<1x128xf32>
    %cst_10 = arith.constant 9.99999974E-6 : f32
    %17 = vector.broadcast %cst_10 : f32 to vector<1x128xf32>
    %18 = arith.addf %15, %17 : vector<1x128xf32>
    %19 = math.rsqrt %18 : vector<1x128xf32>
    %20 = arith.mulf %16, %19 : vector<1x128xf32>
    %c0_11 = arith.constant 0 : index
    %c0_12 = arith.constant 0 : index
    %21 = vector.load %arg3[%c0_11, %c0_12] : memref<1x128xf32, #tpu.memory_space<vmem>>, vector<1x128xf32>
    %22 = arith.mulf %6, %20 : vector<1x128xf32>
    %23 = arith.subf %21, %22 : vector<1x128xf32>
    %24 = vector.broadcast %20 : vector<1x128xf32> to vector<8x128xf32>
    %25 = arith.mulf %2, %24 : vector<8x128xf32>
    %26 = vector.broadcast %23 : vector<1x128xf32> to vector<8x128xf32>
    %27 = arith.addf %25, %26 : vector<8x128xf32>
    %cst_13 = arith.constant 0.000000e+00 : f32
    %28 = vector.broadcast %cst_13 : f32 to vector<8x128xf32>
    %29 = arith.maximumf %27, %28 : vector<8x128xf32>
    %c0_14 = arith.constant 0 : index
    %c0_15 = arith.constant 0 : index
    %30 = vector.load %arg4[%c0_14, %c0_15] : memref<1x128xf32, #tpu.memory_space<vmem>>, vector<1x128xf32>
    %31 = vector.broadcast %30 : vector<1x128xf32> to vector<8x128xf32>
    %32 = arith.mulf %29, %31 : vector<8x128xf32>
    %cst_16 = arith.constant dense<0.000000e+00> : vector<8xf32>
    %33 = vector.multi_reduction <add>, %32, %cst_16 [1] : vector<8x128xf32> to vector<8xf32>
    %34 = vector.shape_cast %33 : vector<8xf32> to vector<8x1xf32>
    %c0_17 = arith.constant 0 : index
    %35 = memref.load %arg5[%c0_17] : memref<1xf32, #tpu.memory_space<smem>>
    %36 = vector.broadcast %35 : f32 to vector<8x1xf32>
    %37 = arith.addf %34, %36 : vector<8x1xf32>
    %c0_18 = arith.constant 0 : index
    %c0_19 = arith.constant 0 : index
    %38 = vector.load %arg6[%c0_18, %c0_19] : memref<8x1xf32, #tpu.memory_space<vmem>>, vector<8x1xf32>
    tpu.vector_store %arg6[%c0_18, %c0_19], %37 {strides = array<i32>} : memref<8x1xf32, #tpu.memory_space<vmem>>, vector<8x1xf32>,
    return
  }
}

</mosaic_0001>

<llo_original>
// kernel: linearmodel_forward.1
$region0: #{linearmodel_forward.1}
  #allocation0 [shape = 'u32[]', space=smem, size = 0x4, offset = 0x4, fixed_abs, tag = 'smem constant byte address 0x4 - core index']
  #allocation1 [shape = 'u32[72,128]{1,0:T(1,128)}', space=vmem, size = 0x9000, scoped, tag = 'internal scratch']
  #allocation2 [shape = 'f32[1]{0:T(128)S(6)}', space=smem, size = 0x200, scoped, tag = 'scoped memory for linearmodel_forward.1']
  %s0 = inlined_call_operand.vmem [shape: bf16[8,128], index: 0, kind: input, shape index: {}]
  %s1 = inlined_call_operand.hbm [shape: bf16[128,128], index: 1, kind: input, shape index: {}]
  %s2 = inlined_call_operand.vmem [shape: f32[1,128], index: 2, kind: input, shape index: {}]
  %s3 = inlined_call_operand.vmem [shape: f32[1,128], index: 3, kind: input, shape index: {}]
  %s4 = inlined_call_operand.vmem [shape: f32[1,128], index: 4, kind: input, shape index: {}]
  %s5 = inlined_call_operand.<no memory space> [shape: f32[1], index: 5, kind: input, shape index: {}]
  %s6 = inlined_call_operand.vmem [shape: f32[8,1], index: 6, kind: output, shape index: {}]
  %s7 = sld [smem:[#allocation0]]
  $region38: #{linearmodel_forward.1} parent=0
    _
  %s9 = ssub.s32 1, %s7
  %s10 = scalar_select 0, %s9, %s7
  %11 = sst [smem:[#allocation2]] %s5
  $region1: #{linearmodel_forward.1} parent=0
    #allocation3 [shape = 'u8[32768]{0}', space=vmem, size = 0x8000, scoped, tag = 'input window, operand 1, single buffered']
    #allocation4 [shape = 's32[1]{0}', space=sflag, size = 0x4, scoped, tag = 'scoped memory for linearmodel_forward.1']
    %12 = vsyncpa [#allocation4], 0
    // Predicated region
    $region2: #{linearmodel_forward.1} parent=1 // pred_check
      _
    $region3: #{linearmodel_forward.1} parent=1 // pred_check_branch
      %14 = sbr.rel (0) target = $region5
    $region4: #{linearmodel_forward.1} parent=1 // pred_region
      _
    $region5: #{linearmodel_forward.1} parent=1 // pred_fallthru
      _
    // Predicated region
    $region6: #{linearmodel_forward.1} parent=1 // pred_check
      _
    $region7: #{linearmodel_forward.1} parent=1 // pred_check_branch
      %16 = sbr.rel (0) target = $region9
    $region8: #{linearmodel_forward.1} parent=1 // pred_region
      %18 = vsyncadd [#allocation4], 0
      %s19 = sshll.u32 %s1, 4
      %s20 = int_to_ptr.hbm [resolvable:$true] %s19
      %s21 = sshll.u32 [#allocation3], 4
      %s22 = int_to_ptr.vmem [resolvable:$true] %s21
      %27 = dma.hbm_to_vmem [thread:$0]  %s20, 1024, %s22, [#allocation4], 64, 64, 4
    $region9: #{linearmodel_forward.1} parent=1 // pred_fallthru
      _
    // Predicated region
    $region10: #{linearmodel_forward.1} parent=1 // pred_check
      _
    $region11: #{linearmodel_forward.1} parent=1 // pred_check_branch
      %29 = sbr.rel (0) target = $region13
    $region12: #{linearmodel_forward.1} parent=1 // pred_region
      _
    $region13: #{linearmodel_forward.1} parent=1 // pred_fallthru
      _
    // Predicated region
    $region14: #{linearmodel_forward.1} parent=1 // pred_check
      _
    $region15: #{linearmodel_forward.1} parent=1 // pred_check_branch
      %31 = sbr.rel (0) target = $region17
    $region16: #{linearmodel_forward.1} parent=1 // pred_region
      _
    $region17: #{linearmodel_forward.1} parent=1 // pred_fallthru
      _
    // Predicated region
    $region18: #{linearmodel_forward.1} parent=1 // pred_check
      _
    $region19: #{linearmodel_forward.1} parent=1 // pred_check_branch
      %33 = sbr.rel (0) target = $region21
    $region20: #{linearmodel_forward.1} parent=1 // pred_region
      _
    $region21: #{linearmodel_forward.1} parent=1 // pred_fallthru
      _
    // Predicated region
    $region22: #{linearmodel_forward.1} parent=1 // pred_check
      _
    $region23: #{linearmodel_forward.1} parent=1 // pred_check_branch
      %35 = sbr.rel (0) target = $region25
    $region24: #{linearmodel_forward.1} parent=1 // pred_region
      _
    $region25: #{linearmodel_forward.1} parent=1 // pred_fallthru
      _
    // Predicated region
    $region26: #{linearmodel_forward.1} parent=1 // pred_check
      _
    $region27: #{linearmodel_forward.1} parent=1 // pred_check_branch
      %37 = sbr.rel (0) target = $region29
    $region28: #{linearmodel_forward.1} parent=1 // pred_region
      %39 = dma.done [#allocation4], 1024
    $region29: #{linearmodel_forward.1} parent=1 // pred_fallthru
      _
    %v40 = vld [vmem:[%s0] sm:$0xf]
    %v41 = vld [vmem:[#allocation3] sm:$0xf]
    %v42 = vld [vmem:[#allocation3 + $0x4] sm:$0xf]
    %v43 = vld [vmem:[#allocation3 + $0x8] sm:$0xf]
    %v44 = vld [vmem:[#allocation3 + $0xc] sm:$0xf]
    %v45 = vld [vmem:[#allocation3 + $0x10] sm:$0xf]
    %v46 = vld [vmem:[#allocation3 + $0x14] sm:$0xf]
    %v47 = vld [vmem:[#allocation3 + $0x18] sm:$0xf]
    %v48 = vld [vmem:[#allocation3 + $0x1c] sm:$0xf]
    %v49 = vld [vmem:[#allocation3 + $0x20] sm:$0xf]
    %v50 = vld [vmem:[#allocation3 + $0x24] sm:$0xf]
    %v51 = vld [vmem:[#allocation3 + $0x28] sm:$0xf]
    %v52 = vld [vmem:[#allocation3 + $0x2c] sm:$0xf]
    %v53 = vld [vmem:[#allocation3 + $0x30] sm:$0xf]
    %v54 = vld [vmem:[#allocation3 + $0x34] sm:$0xf]
    %v55 = vld [vmem:[#allocation3 + $0x38] sm:$0xf]
    %v56 = vld [vmem:[#allocation3 + $0x3c] sm:$0xf]
    %v73 = vunpack.c.l.b16 %v41
    %v74 = vunpack.c.l.b16 %v42
    %v75 = vunpack.c.l.b16 %v43
    %v76 = vunpack.c.l.b16 %v44
    %v77 = vunpack.c.l.b16 %v45
    %v78 = vunpack.c.l.b16 %v46
    %v79 = vunpack.c.l.b16 %v47
    %v80 = vunpack.c.l.b16 %v48
    %v81 = vunpack.c.l.b16 %v49
    %v82 = vunpack.c.l.b16 %v50
    %v83 = vunpack.c.l.b16 %v51
    %v84 = vunpack.c.l.b16 %v52
    %v85 = vunpack.c.l.b16 %v53
    %v86 = vunpack.c.l.b16 %v54
    %v87 = vunpack.c.l.b16 %v55
    %v88 = vunpack.c.l.b16 %v56
    %v89 = vpack.c.b16 %v74, %v73
    %v90 = vpack.c.b16 %v76, %v75
    %v91 = vpack.c.b16 %v78, %v77
    %v92 = vpack.c.b16 %v80, %v79
    %v93 = vpack.c.b16 %v82, %v81
    %v94 = vpack.c.b16 %v84, %v83
    %v95 = vpack.c.b16 %v86, %v85
    %v96 = vpack.c.b16 %v88, %v87
    %105 = vmatpush.bf16.msra.mxu0 %v96
    %106 = vmatpush.bf16.msra.mxu0 %v95
    %107 = vmatpush.bf16.msra.mxu0 %v94
    %108 = vmatpush.bf16.msra.mxu0 %v93
    %109 = vmatpush.bf16.msra.mxu0 %v92
    %110 = vmatpush.bf16.msra.mxu0 %v91
    %111 = vmatpush.bf16.msra.mxu0 %v90
    %112 = vmatpush.bf16.msra.mxu0 %v89
    %113 = vmatmul.bf16.gmra.mxu0 %v40
    %v114 = vpop.f32.mrf.mxu0
    %v115 = vadd.f32 0.0, %v114
    %v116 = vpop.f32.mrf.mxu0
    %117 = vdwg.mxu0
    %v118 = vrot.slane %v115, 4
    %v119 = vadd.f32 %v115, %v118
    %v120 = vrot.slane %v119, 2
    %v121 = vadd.f32 %v119, %v120
    %v122 = vrot.slane %v121, 1
    %v123 = vadd.f32 %v121, %v122
    %v124 = vmul.f32 %v123, 0.125
    %v125 = vmul.f32 %v115, %v115
    %v126 = vrot.slane %v125, 4
    %v127 = vadd.f32 %v125, %v126
    %v128 = vrot.slane %v127, 2
    %v129 = vadd.f32 %v127, %v128
    %v130 = vrot.slane %v129, 1
    %v131 = vadd.f32 %v129, %v130
    %v132 = vmul.f32 %v131, 0.125
    %v133 = vmul.f32 %v124, %v124
    %v134 = vsub.f32 %v132, %v133
    %v135 = vmax.f32 %v134, 0.0
    %v136 = vld [vmem:[%s2] sm:$0x1]
    %v137 = vadd.f32 %v135, 1e-05
    %v138 = vrsqrt.pop %v137
    %v139 = vmul.f32 %v138, %v137
    %v140 = vmul.f32 %v139, %v138
    %v141 = vmul.f32 0.5, %v140
    %v142 = vsub.f32 1.5, %v141
    %v143 = vmul.f32 %v138, %v142
    %vm144 = vweird.f32 %v137
    %vm145 = vweird.f32 %v138
    %vm146 = vmor %vm144, %vm145
    %v147 = vsel %vm146, %v138, %v143
    %v148 = vmul.f32 %v136, %v147
    %v149 = vld [vmem:[%s3] sm:$0x1]
    %v150 = vmul.f32 %v124, %v148
    %v151 = vsub.f32 %v149, %v150
    %v153 = vperm.slane %v148, 0
    %v155 = vmul.f32 %v115, %v153
    %v157 = vperm.slane %v151, 0
    %v159 = vadd.f32 %v155, %v157
    %v160 = vmax.f32 %v159, 0.0
    %v161 = vld [vmem:[%s4] sm:$0x1]
    %v163 = vperm.slane %v161, 0
    %v165 = vmul.f32 %v160, %v163
    %166 = vadd.xlane.f32.xlu0 %v165
    %v167 = vpop.xlane.xlu0 %166
    %s168 = sld [smem:[#allocation2]]
    %v169 = vstv %s168
    %v170 = vadd.f32 %v167, %v169
    %vm171 = vcmask 7168
    %172 = vst.msk [vmem:[%s6] sm:$0xff] %vm171, %v170
    // Predicated region
    $region30: #{linearmodel_forward.1} parent=1 // pred_check
      _
    $region31: #{linearmodel_forward.1} parent=1 // pred_check_branch
      %174 = sbr.rel (0) target = $region33
    $region32: #{linearmodel_forward.1} parent=1 // pred_region
      _
    $region33: #{linearmodel_forward.1} parent=1 // pred_fallthru
      _
    // Predicated region
    $region34: #{linearmodel_forward.1} parent=1 // pred_check
      _
    $region35: #{linearmodel_forward.1} parent=1 // pred_check_branch
      %176 = sbr.rel (0) target = $region37
    $region36: #{linearmodel_forward.1} parent=1 // pred_region
      _
    $region37: #{linearmodel_forward.1} parent=1 // pred_fallthru
      _
    %177 = vsyncpa [#allocation4], 1

</llo_original>
